<compile_context>
chip_gen: v6e
topology: v6e:2x2x1
jax: 0.10.0
libtpu: 0.0.40
codegen_flags: <defaults>
</compile_context>

<pallas_src>
import math

import jax
import jax.numpy as jnp
from jax.experimental import pallas as pl
from jax.experimental.pallas import tpu as pltpu

LN_EPS = 1e-5            # torch.nn.LayerNorm default
LANE = 128               # lane width; packed logits slab width is a multiple of this
MAX_TB = 512             # max batch-tile rows (review: ~85% HBM roofline at 512 on v6e)
VMEM_BUDGET = 24 << 20   # working-set budget -> fits the 32 MiB scoped default everywhere


def _round_up(x, m):
    return (x + m - 1) // m * m


def _mhc_kernel(x_ref, w1_ref, p1_ref, w2_ref, p2_ref, wc_ref, bc_ref, o_ref):
    """One batch tile: per head, 2x(Linear+LayerNorm+ReLU) + packed cls Linear."""
    x = x_ref[...]                       # [TB, F] (f32)
    n_heads = w1_ref.shape[0]
    dot_dtype = w1_ref.dtype             # bf16 or f32 weights; accumulation is always f32

    def linear_ln_relu(h, w, p):
        # Linear on the MXU with f32 accumulation; p rows are (bias, gamma, beta).
        z = jnp.dot(h.astype(dot_dtype), w,
                    preferred_element_type=jnp.float32) + p[0:1, :]
        # Two-pass LayerNorm (numerically safer than E[z^2] - mean^2).
        mean = jnp.mean(z, axis=-1, keepdims=True)
        zc = z - mean
        var = jnp.mean(zc * zc, axis=-1, keepdims=True)
        zn = zc * jax.lax.rsqrt(var + LN_EPS) * p[1:2, :] + p[2:3, :]
        return jnp.maximum(zn, 0.0)      # ReLU (all VPU math stays f32)

    acc = jnp.zeros(o_ref.shape, jnp.float32)
    # Static loop; every head's weights are already VMEM-resident, x is reused.
    for h in range(n_heads):
        a = linear_ln_relu(x, w1_ref[h], p1_ref[h])          # [TB, H]
        a = linear_ln_relu(a, w2_ref[h], p2_ref[h])          # [TB, H]
        # Head h's Wc columns are pre-placed at its class offset inside the
        # 128-wide packed slab -> accumulating per-head matmuls yields all
        # heads' logits in one lane-dense output.
        acc = acc + jnp.dot(a.astype(dot_dtype), wc_ref[h],
                            preferred_element_type=jnp.float32)
    o_ref[...] = acc + bc_ref[...]                            # [TB, C_pad]


def pack_head_params(head_params, dtype=jnp.float32):
    """Stack / pack per-head parameters ONCE (hoisted out of the forward path).

    Matmul weights are stored in `dtype` (pass jnp.bfloat16 for production: the
    MXU is bf16-native, halving weight HBM/VMEM traffic); bias / LayerNorm
    vectors stay f32 and all non-matmul math runs in f32 inside the kernel.
    """
    F, H = head_params[0]["w1"].shape
    for p in head_params:
        assert p["w1"].shape == (F, H) and p["w2"].shape == (H, H), \
            "all heads must share features_size / hidden_size"
    n_classes = tuple(p["wc"].shape[1] for p in head_params)

    offsets, off = [], 0
    for nc in n_classes:
        offsets.append(off)
        off += nc
    c_pad = _round_up(max(off, 1), LANE)   # lane-dense packed-logits width

    w1 = jnp.stack([p["w1"] for p in head_params]).astype(dtype)          # [nH,F,H]
    w2 = jnp.stack([p["w2"] for p in head_params]).astype(dtype)          # [nH,H,H]
    p1 = jnp.stack([jnp.concatenate([p["b1"], p["g1"], p["be1"]], 0)
                    for p in head_params]).astype(jnp.float32)            # [nH,3,H]
    p2 = jnp.stack([jnp.concatenate([p["b2"], p["g2"], p["be2"]], 0)
                    for p in head_params]).astype(jnp.float32)            # [nH,3,H]

    wc_heads = []
    bc = jnp.zeros((1, c_pad), jnp.float32)
    for p, o, nc in zip(head_params, offsets, n_classes):
        w = jnp.zeros((H, c_pad), jnp.float32).at[:, o:o + nc].set(p["wc"])
        wc_heads.append(w.astype(dtype))
        bc = bc.at[:, o:o + nc].set(p["bc"].astype(jnp.float32))
    wc = jnp.stack(wc_heads)                                              # [nH,H,Cpad]

    arrays = dict(w1=w1, p1=p1, w2=w2, p2=p2, wc=wc, bc=bc)
    meta = dict(n_classes=n_classes, offsets=tuple(offsets), c_pad=c_pad,
                features=F, hidden=H, n_heads=len(head_params))
    return arrays, meta


def _choose_batch_tile(B, F, c_pad, weight_bytes, x_itemsize):
    """Largest batch tile whose double-buffered x/out + resident weights fit budget."""
    tb = B if B <= MAX_TB else MAX_TB

    def need(t):
        # 2x for double-buffered streamed operands, 2x weights for safety margin.
        return 2 * t * F * x_itemsize + 2 * t * c_pad * 4 + 2 * weight_bytes

    while tb > 8 and need(tb) > VMEM_BUDGET:
        tb = max(8, (tb // 2) // 8 * 8)
    return tb


def multi_head_classifier(x, packed_arrays, meta):
    """MultiHeadClassifier.forward — one fused pallas_call, returns per-head logits."""
    B, F = x.shape
    assert F == meta["features"]
    c_pad = meta["c_pad"]
    a = packed_arrays
    weight_bytes = sum(int(v.size) * v.dtype.itemsize for v in a.values())
    tb = _choose_batch_tile(B, F, c_pad, weight_bytes, x.dtype.itemsize)
    nb = pl.cdiv(B, tb)   # ragged last tile (if any) is masked by Pallas; no jnp.pad of x

    out = pl.pallas_call(
        _mhc_kernel,
        out_shape=jax.ShapeDtypeStruct((B, c_pad), jnp.float32),
        grid=(nb,),
        in_specs=[
            pl.BlockSpec((tb, F), lambda b: (b, 0)),            # x tile (streamed per step)
            # Per-head weights: constant index_map -> fetched once, VMEM-resident.
            pl.BlockSpec(a["w1"].shape, lambda b: (0, 0, 0)),   # W1  [nH,F,H]
            pl.BlockSpec(a["p1"].shape, lambda b: (0, 0, 0)),   # (b1,g1,be1) [nH,3,H]
            pl.BlockSpec(a["w2"].shape, lambda b: (0, 0, 0)),   # W2  [nH,H,H]
            pl.BlockSpec(a["p2"].shape, lambda b: (0, 0, 0)),   # (b2,g2,be2) [nH,3,H]
            pl.BlockSpec(a["wc"].shape, lambda b: (0, 0, 0)),   # Wc packed [nH,H,Cpad]
            pl.BlockSpec(a["bc"].shape, lambda b: (0, 0)),      # cls bias packed [1,Cpad]
        ],
        out_specs=pl.BlockSpec((tb, c_pad), lambda b: (b, 0)),  # lane-dense packed logits
        compiler_params=pltpu.CompilerParams(
            dimension_semantics=("parallel",),        # batch tiles split across TCs
            vmem_limit_bytes=32 * 1024 * 1024),       # explicit; tile chosen to fit v7x too
    )(x, a["w1"], a["p1"], a["w2"], a["p2"], a["wc"], a["bc"])

    # Slice each head's logits out of the packed slab.
    return tuple(out[:, o:o + nc]
                 for o, nc in zip(meta["offsets"], meta["n_classes"]))


def init_classifier_params(key, features_size, n_class, hidden_size,
                           prior_prob=0.01):
    """Deterministic parameter init mirroring the PyTorch module's shapes."""
    k1, k2, k3, kb1, kb2 = jax.random.split(key, 5)

    def linear_init(kw, fan_in, fan_out):
        # PyTorch nn.Linear default: U(-1/sqrt(fan_in), 1/sqrt(fan_in))
        bound = 1.0 / math.sqrt(fan_in)
        return jax.random.uniform(kw, (fan_in, fan_out), jnp.float32, -bound, bound)

    w1 = linear_init(k1, features_size, hidden_size)
    b1 = jax.random.uniform(kb1, (1, hidden_size), jnp.float32,
                            -1.0 / math.sqrt(features_size),
                            1.0 / math.sqrt(features_size))
    w2 = linear_init(k2, hidden_size, hidden_size)
    b2 = jax.random.uniform(kb2, (1, hidden_size), jnp.float32,
                            -1.0 / math.sqrt(hidden_size),
                            1.0 / math.sqrt(hidden_size))
    wc = linear_init(k3, hidden_size, n_class)
    # cls bias initialized to the focal-loss prior value
    bias_value = -math.log((1.0 - prior_prob) / prior_prob)
    bc = jnp.full((1, n_class), bias_value, jnp.float32)

    return {
        "w1": w1, "b1": b1,
        "g1": jnp.ones((1, hidden_size), jnp.float32),
        "be1": jnp.zeros((1, hidden_size), jnp.float32),
        "w2": w2, "b2": b2,
        "g2": jnp.ones((1, hidden_size), jnp.float32),
        "be2": jnp.zeros((1, hidden_size), jnp.float32),
        "wc": wc, "bc": bc,
    }


def _reference(x, head_params):
    """Plain-JAX reference for correctness check."""
    outs = []
    for p in head_params:
        h = x
        for wi, bi, gi, bei in ((p["w1"], p["b1"], p["g1"], p["be1"]),
                                (p["w2"], p["b2"], p["g2"], p["be2"])):
            z = h @ wi + bi
            mean = z.mean(-1, keepdims=True)
            var = ((z - mean) ** 2).mean(-1, keepdims=True)
            z = (z - mean) / jnp.sqrt(var + LN_EPS) * gi + bei
            h = jnp.maximum(z, 0.0)
        outs.append(h @ p["wc"] + p["bc"])
    return tuple(outs)


if __name__ == "__main__":
    # Small shapes consistent with the module: batch=8, features=32,
    # hidden=128 (module default is 512; kept small but MXU/VPU friendly),
    # two heads with 5 and 3 classes.
    B, F, H = 8, 32, 128
    n_classes = (5, 3)

    key = jax.random.PRNGKey(0)
    kx, *kheads = jax.random.split(key, 1 + len(n_classes))

    x = jax.random.normal(kx, (B, F), jnp.float32)
    head_params = [init_classifier_params(k, F, nc, H)
                   for k, nc in zip(kheads, n_classes)]
    ref = _reference(x, head_params)

    # f32 weights: tight check against the plain-JAX reference.
    arrays_f32, meta = pack_head_params(head_params, dtype=jnp.float32)  # packed once
    logits = multi_head_classifier(x, arrays_f32, meta)
    logits = jax.tree_util.tree_map(jax.block_until_ready, logits)
    for got, want in zip(logits, ref):
        assert got.shape == want.shape
        assert jnp.allclose(got, want, atol=1e-4, rtol=1e-4)

    # bf16-weight production path (f32 accumulation / f32 LayerNorm): loose check.
    arrays_b16, meta_b = pack_head_params(head_params, dtype=jnp.bfloat16)
    logits_b = multi_head_classifier(x, arrays_b16, meta_b)
    logits_b = jax.tree_util.tree_map(jax.block_until_ready, logits_b)
    for got, want in zip(logits_b, ref):
        assert got.shape == want.shape
        assert bool(jnp.isfinite(got).all())
        assert jnp.allclose(got, want, atol=3e-1, rtol=1e-1)

    # TODO(synk): nn.Dropout with p>0 (training-mode random masking) is not
    # implemented; the module default p=0 makes it an identity here.
    print("KERNEL_OK")
</pallas_src>

<mosaic_0001>
module attributes {stable_mosaic.version = 11 : i64} {
  func.func @_mhc_kernel(%arg0: i32, %arg1: memref<8x32xf32, #tpu.memory_space<vmem>>, %arg2: memref<2x32x128xf32, #tpu.memory_space<vmem>>, %arg3: memref<2x3x128xf32, #tpu.memory_space<vmem>>, %arg4: memref<2x128x128xf32, #tpu.memory_space<vmem>>, %arg5: memref<2x3x128xf32, #tpu.memory_space<vmem>>, %arg6: memref<2x128x128xf32, #tpu.memory_space<vmem>>, %arg7: memref<1x128xf32, #tpu.memory_space<vmem>>, %arg8: memref<8x128xf32, #tpu.memory_space<vmem>>) attributes {dimension_semantics = [#tpu.dimension_semantics<parallel>], iteration_bounds = array<i64: 1>, scalar_prefetch = 0 : i64, scratch_operands = 0 : i64, tpu.core_type = #tpu.core_type<tc>, window_params = [{transform_indices = @transform_0, window_bounds = array<i64: 8, 32>}, {pipeline_mode = #tpu.pipeline_mode<synchronous>, transform_indices = @transform_1, window_bounds = array<i64: 2, 32, 128>}, {pipeline_mode = #tpu.pipeline_mode<synchronous>, transform_indices = @transform_2, window_bounds = array<i64: 2, 3, 128>}, {pipeline_mode = #tpu.pipeline_mode<synchronous>, transform_indices = @transform_3, window_bounds = array<i64: 2, 128, 128>}, {pipeline_mode = #tpu.pipeline_mode<synchronous>, transform_indices = @transform_4, window_bounds = array<i64: 2, 3, 128>}, {pipeline_mode = #tpu.pipeline_mode<synchronous>, transform_indices = @transform_5, window_bounds = array<i64: 2, 128, 128>}, {pipeline_mode = #tpu.pipeline_mode<synchronous>, transform_indices = @transform_6, window_bounds = array<i64: 1, 128>}, {transform_indices = @transform_7, window_bounds = array<i64: 8, 128>}]} {
    %c0 = arith.constant 0 : index
    %c0_0 = arith.constant 0 : index
    %0 = vector.load %arg1[%c0, %c0_0] : memref<8x32xf32, #tpu.memory_space<vmem>>, vector<8x32xf32>
    %cst = arith.constant 0.000000e+00 : f32
    %1 = vector.broadcast %cst : f32 to vector<8x128xf32>
    %c0_1 = arith.constant 0 : index
    %c0_2 = arith.constant 0 : index
    %c0_3 = arith.constant 0 : index
    %2 = vector.load %arg2[%c0_1, %c0_2, %c0_3] : memref<2x32x128xf32, #tpu.memory_space<vmem>>, vector<1x32x128xf32>
    %3 = vector.shape_cast %2 : vector<1x32x128xf32> to vector<32x128xf32>
    %c0_4 = arith.constant 0 : index
    %c0_5 = arith.constant 0 : index
    %c0_6 = arith.constant 0 : index
    %4 = vector.load %arg3[%c0_4, %c0_5, %c0_6] : memref<2x3x128xf32, #tpu.memory_space<vmem>>, vector<1x3x128xf32>
    %5 = vector.shape_cast %4 : vector<1x3x128xf32> to vector<3x128xf32>
    %cst_7 = arith.constant dense<0.000000e+00> : vector<8x128xf32>
    %6 = tpu.matmul %0, %3, %cst_7 {dimension_numbers = #tpu.dot_dimension_numbers<[1], [0], [0], [1], [0, 0, 1, 1], [], []>} : vector<8x32xf32>, vector<32x128xf32>, vector<8x128xf32> -> vector<8x128xf32>
    %7 = vector.extract_strided_slice %5 {offsets = [0, 0], sizes = [1, 128], strides = [1, 1]} : vector<3x128xf32> to vector<1x128xf32>
    %8 = vector.broadcast %7 : vector<1x128xf32> to vector<8x128xf32>
    %9 = arith.addf %6, %8 : vector<8x128xf32>
    %cst_8 = arith.constant dense<0.000000e+00> : vector<8xf32>
    %10 = vector.multi_reduction <add>, %9, %cst_8 [1] : vector<8x128xf32> to vector<8xf32>
    %11 = vector.shape_cast %10 : vector<8xf32> to vector<8x1xf32>
    %cst_9 = arith.constant 1.280000e+02 : f32
    %12 = vector.broadcast %cst_9 : f32 to vector<8x1xf32>
    %13 = arith.divf %11, %12 : vector<8x1xf32>
    %14 = vector.broadcast %13 : vector<8x1xf32> to vector<8x128xf32>
    %15 = arith.subf %9, %14 : vector<8x128xf32>
    %16 = arith.mulf %15, %15 : vector<8x128xf32>
    %cst_10 = arith.constant dense<0.000000e+00> : vector<8xf32>
    %17 = vector.multi_reduction <add>, %16, %cst_10 [1] : vector<8x128xf32> to vector<8xf32>
    %18 = vector.shape_cast %17 : vector<8xf32> to vector<8x1xf32>
    %cst_11 = arith.constant 1.280000e+02 : f32
    %19 = vector.broadcast %cst_11 : f32 to vector<8x1xf32>
    %20 = arith.divf %18, %19 : vector<8x1xf32>
    %cst_12 = arith.constant 9.99999974E-6 : f32
    %21 = vector.broadcast %cst_12 : f32 to vector<8x1xf32>
    %22 = arith.addf %20, %21 : vector<8x1xf32>
    %23 = math.rsqrt %22 : vector<8x1xf32>
    %24 = vector.broadcast %23 : vector<8x1xf32> to vector<8x128xf32>
    %25 = arith.mulf %15, %24 : vector<8x128xf32>
    %26 = vector.extract_strided_slice %5 {offsets = [1, 0], sizes = [1, 128], strides = [1, 1]} : vector<3x128xf32> to vector<1x128xf32>
    %27 = vector.broadcast %26 : vector<1x128xf32> to vector<8x128xf32>
    %28 = arith.mulf %25, %27 : vector<8x128xf32>
    %29 = vector.extract_strided_slice %5 {offsets = [2, 0], sizes = [1, 128], strides = [1, 1]} : vector<3x128xf32> to vector<1x128xf32>
    %30 = vector.broadcast %29 : vector<1x128xf32> to vector<8x128xf32>
    %31 = arith.addf %28, %30 : vector<8x128xf32>
    %cst_13 = arith.constant 0.000000e+00 : f32
    %32 = vector.broadcast %cst_13 : f32 to vector<8x128xf32>
    %33 = arith.maximumf %31, %32 : vector<8x128xf32>
    %c0_14 = arith.constant 0 : index
    %c0_15 = arith.constant 0 : index
    %c0_16 = arith.constant 0 : index
    %34 = vector.load %arg4[%c0_14, %c0_15, %c0_16] : memref<2x128x128xf32, #tpu.memory_space<vmem>>, vector<1x128x128xf32>
    %35 = vector.shape_cast %34 : vector<1x128x128xf32> to vector<128x128xf32>
    %c0_17 = arith.constant 0 : index
    %c0_18 = arith.constant 0 : index
    %c0_19 = arith.constant 0 : index
    %36 = vector.load %arg5[%c0_17, %c0_18, %c0_19] : memref<2x3x128xf32, #tpu.memory_space<vmem>>, vector<1x3x128xf32>
    %37 = vector.shape_cast %36 : vector<1x3x128xf32> to vector<3x128xf32>
    %cst_20 = arith.constant dense<0.000000e+00> : vector<8x128xf32>
    %38 = tpu.matmul %33, %35, %cst_20 {dimension_numbers = #tpu.dot_dimension_numbers<[1], [0], [0], [1], [0, 0, 1, 1], [], []>} : vector<8x128xf32>, vector<128x128xf32>, vector<8x128xf32> -> vector<8x128xf32>
    %39 = vector.extract_strided_slice %37 {offsets = [0, 0], sizes = [1, 128], strides = [1, 1]} : vector<3x128xf32> to vector<1x128xf32>
    %40 = vector.broadcast %39 : vector<1x128xf32> to vector<8x128xf32>
    %41 = arith.addf %38, %40 : vector<8x128xf32>
    %cst_21 = arith.constant dense<0.000000e+00> : vector<8xf32>
    %42 = vector.multi_reduction <add>, %41, %cst_21 [1] : vector<8x128xf32> to vector<8xf32>
    %43 = vector.shape_cast %42 : vector<8xf32> to vector<8x1xf32>
    %cst_22 = arith.constant 1.280000e+02 : f32
    %44 = vector.broadcast %cst_22 : f32 to vector<8x1xf32>
    %45 = arith.divf %43, %44 : vector<8x1xf32>
    %46 = vector.broadcast %45 : vector<8x1xf32> to vector<8x128xf32>
    %47 = arith.subf %41, %46 : vector<8x128xf32>
    %48 = arith.mulf %47, %47 : vector<8x128xf32>
    %cst_23 = arith.constant dense<0.000000e+00> : vector<8xf32>
    %49 = vector.multi_reduction <add>, %48, %cst_23 [1] : vector<8x128xf32> to vector<8xf32>
    %50 = vector.shape_cast %49 : vector<8xf32> to vector<8x1xf32>
    %cst_24 = arith.constant 1.280000e+02 : f32
    %51 = vector.broadcast %cst_24 : f32 to vector<8x1xf32>
    %52 = arith.divf %50, %51 : vector<8x1xf32>
    %cst_25 = arith.constant 9.99999974E-6 : f32
    %53 = vector.broadcast %cst_25 : f32 to vector<8x1xf32>
    %54 = arith.addf %52, %53 : vector<8x1xf32>
    %55 = math.rsqrt %54 : vector<8x1xf32>
    %56 = vector.broadcast %55 : vector<8x1xf32> to vector<8x128xf32>
    %57 = arith.mulf %47, %56 : vector<8x128xf32>
    %58 = vector.extract_strided_slice %37 {offsets = [1, 0], sizes = [1, 128], strides = [1, 1]} : vector<3x128xf32> to vector<1x128xf32>
    %59 = vector.broadcast %58 : vector<1x128xf32> to vector<8x128xf32>
    %60 = arith.mulf %57, %59 : vector<8x128xf32>
    %61 = vector.extract_strided_slice %37 {offsets = [2, 0], sizes = [1, 128], strides = [1, 1]} : vector<3x128xf32> to vector<1x128xf32>
    %62 = vector.broadcast %61 : vector<1x128xf32> to vector<8x128xf32>
    %63 = arith.addf %60, %62 : vector<8x128xf32>
    %cst_26 = arith.constant 0.000000e+00 : f32
    %64 = vector.broadcast %cst_26 : f32 to vector<8x128xf32>
    %65 = arith.maximumf %63, %64 : vector<8x128xf32>
    %c0_27 = arith.constant 0 : index
    %c0_28 = arith.constant 0 : index
    %c0_29 = arith.constant 0 : index
    %66 = vector.load %arg6[%c0_27, %c0_28, %c0_29] : memref<2x128x128xf32, #tpu.memory_space<vmem>>, vector<1x128x128xf32>
    %67 = vector.shape_cast %66 : vector<1x128x128xf32> to vector<128x128xf32>
    %cst_30 = arith.constant dense<0.000000e+00> : vector<8x128xf32>
    %68 = tpu.matmul %65, %67, %cst_30 {dimension_numbers = #tpu.dot_dimension_numbers<[1], [0], [0], [1], [0, 0, 1, 1], [], []>} : vector<8x128xf32>, vector<128x128xf32>, vector<8x128xf32> -> vector<8x128xf32>
    %69 = arith.addf %1, %68 : vector<8x128xf32>
    %c1 = arith.constant 1 : index
    %c0_31 = arith.constant 0 : index
    %c0_32 = arith.constant 0 : index
    %70 = vector.load %arg2[%c1, %c0_31, %c0_32] : memref<2x32x128xf32, #tpu.memory_space<vmem>>, vector<1x32x128xf32>
    %71 = vector.shape_cast %70 : vector<1x32x128xf32> to vector<32x128xf32>
    %c1_33 = arith.constant 1 : index
    %c0_34 = arith.constant 0 : index
    %c0_35 = arith.constant 0 : index
    %72 = vector.load %arg3[%c1_33, %c0_34, %c0_35] : memref<2x3x128xf32, #tpu.memory_space<vmem>>, vector<1x3x128xf32>
    %73 = vector.shape_cast %72 : vector<1x3x128xf32> to vector<3x128xf32>
    %cst_36 = arith.constant dense<0.000000e+00> : vector<8x128xf32>
    %74 = tpu.matmul %0, %71, %cst_36 {dimension_numbers = #tpu.dot_dimension_numbers<[1], [0], [0], [1], [0, 0, 1, 1], [], []>} : vector<8x32xf32>, vector<32x128xf32>, vector<8x128xf32> -> vector<8x128xf32>
    %75 = vector.extract_strided_slice %73 {offsets = [0, 0], sizes = [1, 128], strides = [1, 1]} : vector<3x128xf32> to vector<1x128xf32>
    %76 = vector.broadcast %75 : vector<1x128xf32> to vector<8x128xf32>
    %77 = arith.addf %74, %76 : vector<8x128xf32>
    %cst_37 = arith.constant dense<0.000000e+00> : vector<8xf32>
    %78 = vector.multi_reduction <add>, %77, %cst_37 [1] : vector<8x128xf32> to vector<8xf32>
    %79 = vector.shape_cast %78 : vector<8xf32> to vector<8x1xf32>
    %cst_38 = arith.constant 1.280000e+02 : f32
    %80 = vector.broadcast %cst_38 : f32 to vector<8x1xf32>
    %81 = arith.divf %79, %80 : vector<8x1xf32>
    %82 = vector.broadcast %81 : vector<8x1xf32> to vector<8x128xf32>
    %83 = arith.subf %77, %82 : vector<8x128xf32>
    %84 = arith.mulf %83, %83 : vector<8x128xf32>
    %cst_39 = arith.constant dense<0.000000e+00> : vector<8xf32>
    %85 = vector.multi_reduction <add>, %84, %cst_39 [1] : vector<8x128xf32> to vector<8xf32>
    %86 = vector.shape_cast %85 : vector<8xf32> to vector<8x1xf32>
    %cst_40 = arith.constant 1.280000e+02 : f32
    %87 = vector.broadcast %cst_40 : f32 to vector<8x1xf32>
    %88 = arith.divf %86, %87 : vector<8x1xf32>
    %cst_41 = arith.constant 9.99999974E-6 : f32
    %89 = vector.broadcast %cst_41 : f32 to vector<8x1xf32>
    %90 = arith.addf %88, %89 : vector<8x1xf32>
    %91 = math.rsqrt %90 : vector<8x1xf32>
    %92 = vector.broadcast %91 : vector<8x1xf32> to vector<8x128xf32>
    %93 = arith.mulf %83, %92 : vector<8x128xf32>
    %94 = vector.extract_strided_slice %73 {offsets = [1, 0], sizes = [1, 128], strides = [1, 1]} : vector<3x128xf32> to vector<1x128xf32>
    %95 = vector.broadcast %94 : vector<1x128xf32> to vector<8x128xf32>
    %96 = arith.mulf %93, %95 : vector<8x128xf32>
    %97 = vector.extract_strided_slice %73 {offsets = [2, 0], sizes = [1, 128], strides = [1, 1]} : vector<3x128xf32> to vector<1x128xf32>
    %98 = vector.broadcast %97 : vector<1x128xf32> to vector<8x128xf32>
    %99 = arith.addf %96, %98 : vector<8x128xf32>
    %cst_42 = arith.constant 0.000000e+00 : f32
    %100 = vector.broadcast %cst_42 : f32 to vector<8x128xf32>
    %101 = arith.maximumf %99, %100 : vector<8x128xf32>
    %c1_43 = arith.constant 1 : index
    %c0_44 = arith.constant 0 : index
    %c0_45 = arith.constant 0 : index
    %102 = vector.load %arg4[%c1_43, %c0_44, %c0_45] : memref<2x128x128xf32, #tpu.memory_space<vmem>>, vector<1x128x128xf32>
    %103 = vector.shape_cast %102 : vector<1x128x128xf32> to vector<128x128xf32>
    %c1_46 = arith.constant 1 : index
    %c0_47 = arith.constant 0 : index
    %c0_48 = arith.constant 0 : index
    %104 = vector.load %arg5[%c1_46, %c0_47, %c0_48] : memref<2x3x128xf32, #tpu.memory_space<vmem>>, vector<1x3x128xf32>
    %105 = vector.shape_cast %104 : vector<1x3x128xf32> to vector<3x128xf32>
    %cst_49 = arith.constant dense<0.000000e+00> : vector<8x128xf32>
    %106 = tpu.matmul %101, %103, %cst_49 {dimension_numbers = #tpu.dot_dimension_numbers<[1], [0], [0], [1], [0, 0, 1, 1], [], []>} : vector<8x128xf32>, vector<128x128xf32>, vector<8x128xf32> -> vector<8x128xf32>
    %107 = vector.extract_strided_slice %105 {offsets = [0, 0], sizes = [1, 128], strides = [1, 1]} : vector<3x128xf32> to vector<1x128xf32>
    %108 = vector.broadcast %107 : vector<1x128xf32> to vector<8x128xf32>
    %109 = arith.addf %106, %108 : vector<8x128xf32>
    %cst_50 = arith.constant dense<0.000000e+00> : vector<8xf32>
    %110 = vector.multi_reduction <add>, %109, %cst_50 [1] : vector<8x128xf32> to vector<8xf32>
    %111 = vector.shape_cast %110 : vector<8xf32> to vector<8x1xf32>
    %cst_51 = arith.constant 1.280000e+02 : f32
    %112 = vector.broadcast %cst_51 : f32 to vector<8x1xf32>
    %113 = arith.divf %111, %112 : vector<8x1xf32>
    %114 = vector.broadcast %113 : vector<8x1xf32> to vector<8x128xf32>
    %115 = arith.subf %109, %114 : vector<8x128xf32>
    %116 = arith.mulf %115, %115 : vector<8x128xf32>
    %cst_52 = arith.constant dense<0.000000e+00> : vector<8xf32>
    %117 = vector.multi_reduction <add>, %116, %cst_52 [1] : vector<8x128xf32> to vector<8xf32>
    %118 = vector.shape_cast %117 : vector<8xf32> to vector<8x1xf32>
    %cst_53 = arith.constant 1.280000e+02 : f32
    %119 = vector.broadcast %cst_53 : f32 to vector<8x1xf32>
    %120 = arith.divf %118, %119 : vector<8x1xf32>
    %cst_54 = arith.constant 9.99999974E-6 : f32
    %121 = vector.broadcast %cst_54 : f32 to vector<8x1xf32>
    %122 = arith.addf %120, %121 : vector<8x1xf32>
    %123 = math.rsqrt %122 : vector<8x1xf32>
    %124 = vector.broadcast %123 : vector<8x1xf32> to vector<8x128xf32>
    %125 = arith.mulf %115, %124 : vector<8x128xf32>
    %126 = vector.extract_strided_slice %105 {offsets = [1, 0], sizes = [1, 128], strides = [1, 1]} : vector<3x128xf32> to vector<1x128xf32>
    %127 = vector.broadcast %126 : vector<1x128xf32> to vector<8x128xf32>
    %128 = arith.mulf %125, %127 : vector<8x128xf32>
    %129 = vector.extract_strided_slice %105 {offsets = [2, 0], sizes = [1, 128], strides = [1, 1]} : vector<3x128xf32> to vector<1x128xf32>
    %130 = vector.broadcast %129 : vector<1x128xf32> to vector<8x128xf32>
    %131 = arith.addf %128, %130 : vector<8x128xf32>
    %cst_55 = arith.constant 0.000000e+00 : f32
    %132 = vector.broadcast %cst_55 : f32 to vector<8x128xf32>
    %133 = arith.maximumf %131, %132 : vector<8x128xf32>
    %c1_56 = arith.constant 1 : index
    %c0_57 = arith.constant 0 : index
    %c0_58 = arith.constant 0 : index
    %134 = vector.load %arg6[%c1_56, %c0_57, %c0_58] : memref<2x128x128xf32, #tpu.memory_space<vmem>>, vector<1x128x128xf32>
    %135 = vector.shape_cast %134 : vector<1x128x128xf32> to vector<128x128xf32>
    %cst_59 = arith.constant dense<0.000000e+00> : vector<8x128xf32>
    %136 = tpu.matmul %133, %135, %cst_59 {dimension_numbers = #tpu.dot_dimension_numbers<[1], [0], [0], [1], [0, 0, 1, 1], [], []>} : vector<8x128xf32>, vector<128x128xf32>, vector<8x128xf32> -> vector<8x128xf32>
    %137 = arith.addf %69, %136 : vector<8x128xf32>
    %c0_60 = arith.constant 0 : index
    %c0_61 = arith.constant 0 : index
    %138 = vector.load %arg7[%c0_60, %c0_61] : memref<1x128xf32, #tpu.memory_space<vmem>>, vector<1x128xf32>
    %139 = vector.broadcast %138 : vector<1x128xf32> to vector<8x128xf32>
    %140 = arith.addf %137, %139 : vector<8x128xf32>
    %c0_62 = arith.constant 0 : index
    %c0_63 = arith.constant 0 : index
    %141 = vector.load %arg8[%c0_62, %c0_63] : memref<8x128xf32, #tpu.memory_space<vmem>>, vector<8x128xf32>
    tpu.vector_store %arg8[%c0_62, %c0_63], %140 {strides = array<i32>} : memref<8x128xf32, #tpu.memory_space<vmem>>, vector<8x128xf32>,
    return
  }
  func.func @transform_0(%arg0: i32) -> (i32, i32) {
    %c0_i32 = arith.constant 0 : i32
    %c0_i32_0 = arith.constant 0 : i32
    return %arg0, %c0_i32 : i32, i32
  }
  func.func @transform_1(%arg0: i32) -> (i32, i32, i32) {
    %c0_i32 = arith.constant 0 : i32
    %c0_i32_0 = arith.constant 0 : i32
    %c0_i32_1 = arith.constant 0 : i32
    %c0_i32_2 = arith.constant 0 : i32
    return %c0_i32, %c0_i32_0, %c0_i32_1 : i32, i32, i32
  }
  func.func @transform_2(%arg0: i32) -> (i32, i32, i32) {
    %c0_i32 = arith.constant 0 : i32
    %c0_i32_0 = arith.constant 0 : i32
    %c0_i32_1 = arith.constant 0 : i32
    %c0_i32_2 = arith.constant 0 : i32
    return %c0_i32, %c0_i32_0, %c0_i32_1 : i32, i32, i32
  }
  func.func @transform_3(%arg0: i32) -> (i32, i32, i32) {
    %c0_i32 = arith.constant 0 : i32
    %c0_i32_0 = arith.constant 0 : i32
    %c0_i32_1 = arith.constant 0 : i32
    %c0_i32_2 = arith.constant 0 : i32
    return %c0_i32, %c0_i32_0, %c0_i32_1 : i32, i32, i32
  }
  func.func @transform_4(%arg0: i32) -> (i32, i32, i32) {
    %c0_i32 = arith.constant 0 : i32
    %c0_i32_0 = arith.constant 0 : i32
    %c0_i32_1 = arith.constant 0 : i32
    %c0_i32_2 = arith.constant 0 : i32
    return %c0_i32, %c0_i32_0, %c0_i32_1 : i32, i32, i32
  }
  func.func @transform_5(%arg0: i32) -> (i32, i32, i32) {
    %c0_i32 = arith.constant 0 : i32
    %c0_i32_0 = arith.constant 0 : i32
    %c0_i32_1 = arith.constant 0 : i32
    %c0_i32_2 = arith.constant 0 : i32
    return %c0_i32, %c0_i32_0, %c0_i32_1 : i32, i32, i32
  }
  func.func @transform_6(%arg0: i32) -> (i32, i32) {
    %c0_i32 = arith.constant 0 : i32
    %c0_i32_0 = arith.constant 0 : i32
    %c0_i32_1 = arith.constant 0 : i32
    return %c0_i32, %c0_i32_0 : i32, i32
  }
  func.func @transform_7(%arg0: i32) -> (i32, i32) {
    %c0_i32 = arith.constant 0 : i32
    %c0_i32_0 = arith.constant 0 : i32
    return %arg0, %c0_i32 : i32, i32
  }
}

</mosaic_0001>

<llo_original>
// kernel: tpu_custom_call.1
$region0: #{tpu_custom_call.1}
  #allocation0 [shape = 'u32[]', space=smem, size = 0x4, offset = 0x4, fixed_abs, tag = 'smem constant byte address 0x4 - core index']
  #allocation1 [shape = 'u32[144,128]{1,0:T(1,128)}', space=vmem, size = 0x12000, scoped, tag = 'internal scratch']
  %s0 = inlined_call_operand.vmem [shape: f32[8,32], index: 0, kind: input, shape index: {}]
  %s1 = inlined_call_operand.hbm [shape: f32[2,32,128], index: 1, kind: input, shape index: {}]
  %s2 = inlined_call_operand.vmem [shape: f32[2,3,128], index: 2, kind: input, shape index: {}]
  %s3 = inlined_call_operand.hbm [shape: f32[2,128,128], index: 3, kind: input, shape index: {}]
  %s4 = inlined_call_operand.vmem [shape: f32[2,3,128], index: 4, kind: input, shape index: {}]
  %s5 = inlined_call_operand.hbm [shape: f32[2,128,128], index: 5, kind: input, shape index: {}]
  %s6 = inlined_call_operand.vmem [shape: f32[1,128], index: 6, kind: input, shape index: {}]
  %s7 = inlined_call_operand.hbm [shape: f32[8,128], index: 7, kind: output, shape index: {}]
  %s8 = sld [smem:[#allocation0]]
  $region50: #{tpu_custom_call.1} parent=0
    _
  %s10 = ssub.s32 1, %s8
  %s11 = scalar_select 0, %s10, %s8
  $region1: #{tpu_custom_call.1} parent=0
    #allocation2 [shape = 'u8[32768]{0}', space=vmem, size = 0x8000, scoped, tag = 'input window, operand 1, single buffered']
    #allocation3 [shape = 's32[1]{0}', space=sflag, size = 0x4, scoped, tag = 'scoped memory for tpu_custom_call.1']
    #allocation4 [shape = 's32[1]{0}', space=sflag, size = 0x4, scoped, tag = 'scoped memory for tpu_custom_call.1']
    #allocation5 [shape = 'u8[131072]{0}', space=vmem, size = 0x20000, scoped, tag = 'input window, operand 3, single buffered']
    #allocation6 [shape = 's32[1]{0}', space=sflag, size = 0x4, scoped, tag = 'scoped memory for tpu_custom_call.1']
    #allocation7 [shape = 'u8[131072]{0}', space=vmem, size = 0x20000, scoped, tag = 'input window, operand 5, single buffered']
    #allocation8 [shape = 'u8[4096]{0}', space=vmem, size = 0x1000, scoped, tag = 'output window, operand 0, single buffered']
    %12 = vsyncpa [#allocation3], 0
    %13 = vsyncpa [#allocation6], 0
    %14 = vsyncpa [#allocation4], 0
    // Predicated region
    $region2: #{tpu_custom_call.1} parent=1 // pred_check
      _
    $region3: #{tpu_custom_call.1} parent=1 // pred_check_branch
      %16 = sbr.rel (0) target = $region5
    $region4: #{tpu_custom_call.1} parent=1 // pred_region
      _
    $region5: #{tpu_custom_call.1} parent=1 // pred_fallthru
      _
    // Predicated region
    $region6: #{tpu_custom_call.1} parent=1 // pred_check
      _
    $region7: #{tpu_custom_call.1} parent=1 // pred_check_branch
      %18 = sbr.rel (0) target = $region9
    $region8: #{tpu_custom_call.1} parent=1 // pred_region
      %s20 = ssub.s32 1024, 1024
      %21 = vsyncadd [#allocation3], %s20
      %s22 = sshll.u32 [#allocation2], 4
      %s23 = int_to_ptr.vmem [resolvable:$true] %s22
      %28 = dma.hbm_to_vmem [thread:$0]  %s1, 1024, %s23, [#allocation3], 128, 128, 8
    $region9: #{tpu_custom_call.1} parent=1 // pred_fallthru
      _
    // Predicated region
    $region10: #{tpu_custom_call.1} parent=1 // pred_check
      _
    $region11: #{tpu_custom_call.1} parent=1 // pred_check_branch
      %30 = sbr.rel (0) target = $region13
    $region12: #{tpu_custom_call.1} parent=1 // pred_region
      _
    $region13: #{tpu_custom_call.1} parent=1 // pred_fallthru
      _
    // Predicated region
    $region14: #{tpu_custom_call.1} parent=1 // pred_check
      _
    $region15: #{tpu_custom_call.1} parent=1 // pred_check_branch
      %32 = sbr.rel (0) target = $region17
    $region16: #{tpu_custom_call.1} parent=1 // pred_region
      %s34 = ssub.s32 4096, 4096
      %35 = vsyncadd [#allocation6], %s34
      %s36 = sshll.u32 [#allocation5], 4
      %s37 = int_to_ptr.vmem [resolvable:$true] %s36
      %42 = dma.hbm_to_vmem [thread:$0]  %s3, 4096, %s37, [#allocation6], 128, 128, 8
    $region17: #{tpu_custom_call.1} parent=1 // pred_fallthru
      _
    // Predicated region
    $region18: #{tpu_custom_call.1} parent=1 // pred_check
      _
    $region19: #{tpu_custom_call.1} parent=1 // pred_check_branch
      %44 = sbr.rel (0) target = $region21
    $region20: #{tpu_custom_call.1} parent=1 // pred_region
      _
    $region21: #{tpu_custom_call.1} parent=1 // pred_fallthru
      _
    // Predicated region
    $region22: #{tpu_custom_call.1} parent=1 // pred_check
      _
    $region23: #{tpu_custom_call.1} parent=1 // pred_check_branch
      %46 = sbr.rel (0) target = $region25
    $region24: #{tpu_custom_call.1} parent=1 // pred_region
      %s48 = ssub.s32 4096, 4096
      %49 = vsyncadd [#allocation6], %s48
      %s50 = sshll.u32 [#allocation7], 4
      %s51 = int_to_ptr.vmem [resolvable:$true] %s50
      %56 = dma.hbm_to_vmem [thread:$0]  %s5, 4096, %s51, [#allocation6], 128, 128, 8
    $region25: #{tpu_custom_call.1} parent=1 // pred_fallthru
      _
    // Predicated region
    $region26: #{tpu_custom_call.1} parent=1 // pred_check
      _
    $region27: #{tpu_custom_call.1} parent=1 // pred_check_branch
      %58 = sbr.rel (0) target = $region29
    $region28: #{tpu_custom_call.1} parent=1 // pred_region
      _
    $region29: #{tpu_custom_call.1} parent=1 // pred_fallthru
      _
    // Predicated region
    $region30: #{tpu_custom_call.1} parent=1 // pred_check
      _
    $region31: #{tpu_custom_call.1} parent=1 // pred_check_branch
      %60 = sbr.rel (0) target = $region33
    $region32: #{tpu_custom_call.1} parent=1 // pred_region
      %61 = dma.done [#allocation3], 1024
    $region33: #{tpu_custom_call.1} parent=1 // pred_fallthru
      _
    // Predicated region
    $region34: #{tpu_custom_call.1} parent=1 // pred_check
      _
    $region35: #{tpu_custom_call.1} parent=1 // pred_check_branch
      %63 = sbr.rel (0) target = $region37
    $region36: #{tpu_custom_call.1} parent=1 // pred_region
      %64 = dma.done [#allocation6], 4096
    $region37: #{tpu_custom_call.1} parent=1 // pred_fallthru
      _
    // Predicated region
    $region38: #{tpu_custom_call.1} parent=1 // pred_check
      _
    $region39: #{tpu_custom_call.1} parent=1 // pred_check_branch
      %66 = sbr.rel (0) target = $region41
    $region40: #{tpu_custom_call.1} parent=1 // pred_region
      %67 = dma.done [#allocation6], 4096
    $region41: #{tpu_custom_call.1} parent=1 // pred_fallthru
      _
    %v68 = vld [vmem:[%s0] sm:$0xff]
    %v69 = vld [vmem:[#allocation2] sm:$0xff]
    %v70 = vld [vmem:[#allocation2 + $0x8] sm:$0xff]
    %v71 = vld [vmem:[#allocation2 + $0x10] sm:$0xff]
    %v72 = vld [vmem:[#allocation2 + $0x18] sm:$0xff]
    %v73 = vld [vmem:[%s2] sm:$0x7]
    %v74 = vlaneseq
    %v75 = vshrl.u32 %v74, 7
    %v76 = vsub.s32 0, %v75
    %v77 = vrot.slane %v73, %v76
    %vm78 = vcmask 261120
    %v80 = vsel %vm78, %v68, 0
    %82 = vmatprep.subr.mxu0 0.0
    %83 = vmatpush1.msra.mxu0 0.0
    %84 = vmatprep.subr.mxu0 0.0
    %85 = vmatpush1.msra.mxu0 0.0
    %86 = vmatprep.subr.mxu0 0.0
    %87 = vmatpush1.msra.mxu0 0.0
    %88 = vmatprep.subr.mxu0 0.0
    %89 = vmatpush1.msra.mxu0 0.0
    %90 = vmatprep.subr.mxu0 0.0
    %91 = vmatpush1.msra.mxu0 0.0
    %92 = vmatprep.subr.mxu0 0.0
    %93 = vmatpush1.msra.mxu0 0.0
    %94 = vmatprep.subr.mxu0 0.0
    %95 = vmatpush1.msra.mxu0 0.0
    %96 = vmatprep.subr.mxu0 0.0
    %97 = vmatpush1.msra.mxu0 0.0
    %98 = vmatprep.subr.mxu0 0.0
    %99 = vmatpush1.msra.mxu0 0.0
    %100 = vmatprep.subr.mxu0 0.0
    %101 = vmatpush1.msra.mxu0 0.0
    %102 = vmatprep.subr.mxu0 0.0
    %103 = vmatpush1.msra.mxu0 0.0
    %104 = vmatprep.subr.mxu0 0.0
    %105 = vmatpush1.msra.mxu0 0.0
    %106 = vmatprep.subr.mxu0 0.0
    %107 = vmatpush1.msra.mxu0 %v72
    %108 = vmatprep.subr.mxu0 0.0
    %109 = vmatpush1.msra.mxu0 %v71
    %110 = vmatprep.subr.mxu0 0.0
    %111 = vmatpush1.msra.mxu0 %v70
    %112 = vmatprep.subr.mxu0 0.0
    %113 = vmatpush1.msra.mxu0 %v69
    %114 = vmatprep.subr.mxu0 0.0
    %115 = vmatpush2.msra.mxu0 0.0
    %116 = vmatprep.subr.mxu0 0.0
    %117 = vmatpush2.msra.mxu0 0.0
    %118 = vmatprep.subr.mxu0 0.0
    %119 = vmatpush2.msra.mxu0 0.0
    %120 = vmatprep.subr.mxu0 0.0
    %121 = vmatpush2.msra.mxu0 0.0
    %122 = vmatprep.subr.mxu0 0.0
    %123 = vmatpush2.msra.mxu0 0.0
    %124 = vmatprep.subr.mxu0 0.0
    %125 = vmatpush2.msra.mxu0 0.0
    %126 = vmatprep.subr.mxu0 0.0
    %127 = vmatpush2.msra.mxu0 0.0
    %128 = vmatprep.subr.mxu0 0.0
    %129 = vmatpush2.msra.mxu0 0.0
    %130 = vmatprep.subr.mxu0 0.0
    %131 = vmatpush2.msra.mxu0 0.0
    %132 = vmatprep.subr.mxu0 0.0
    %133 = vmatpush2.msra.mxu0 0.0
    %134 = vmatprep.subr.mxu0 0.0
    %135 = vmatpush2.msra.mxu0 0.0
    %136 = vmatprep.subr.mxu0 0.0
    %137 = vmatpush2.msra.mxu0 0.0
    %138 = vmatprep.subr.mxu0 0.0
    %139 = vmatpush2.msra.mxu0 0.0
    %140 = vmatprep.subr.mxu0 0.0
    %141 = vmatpush2.msra.mxu0 0.0
    %142 = vmatprep.subr.mxu0 0.0
    %143 = vmatpush2.msra.mxu0 0.0
    %144 = vmatprep.subr.mxu0 0.0
    %145 = vmatpush2.msra.mxu0 0.0
    %146 = vmatprep.mubr.f32.mxu0 0.0
    %147 = vmatmul.mubr.f32.gmra.mxu0 %v80
    %v148 = vpop.f32.mrf.mxu0
    %v149 = vadd.f32 %v77, %v148
    %v150 = vpop.f32.mrf.mxu0
    %151 = vdwg.mxu0
    %152 = vadd.xlane.f32.xlu0 %v149
    %v153 = vpop.xlane.xlu0 %152
    %v154 = vrcp.pop 128.0
    %v155 = vmul.f32 %v153, %v154
    %v156 = vsub.f32 %v149, %v155
    %v157 = vmul.f32 %v156, %v156
    %158 = vadd.xlane.f32.xlu0 %v157
    %v159 = vpop.xlane.xlu0 %158
    %v160 = vmul.f32 %v159, %v154
    %v161 = vadd.f32 %v160, 1e-05
    %v162 = vrsqrt.pop %v161
    %v163 = vmul.f32 %v156, %v162
    %v164 = vlaneseq
    %v165 = vshrl.u32 %v164, 7
    %v166 = vsub.s32 1, %v165
    %v167 = vrot.slane %v73, %v166
    %v168 = vmul.f32 %v163, %v167
    %v169 = vlaneseq
    %v170 = vshrl.u32 %v169, 7
    %v171 = vsub.s32 2, %v170
    %v172 = vrot.slane %v73, %v171
    %v173 = vadd.f32 %v168, %v172
    %v174 = vmax.f32 %v173, 0.0
    %v175 = vld [vmem:[#allocation5] sm:$0xff]
    %v176 = vld [vmem:[#allocation5 + $0x8] sm:$0xff]
    %v177 = vld [vmem:[#allocation5 + $0x10] sm:$0xff]
    %v178 = vld [vmem:[#allocation5 + $0x18] sm:$0xff]
    %v179 = vld [vmem:[#allocation5 + $0x20] sm:$0xff]
    %v180 = vld [vmem:[#allocation5 + $0x28] sm:$0xff]
    %v181 = vld [vmem:[#allocation5 + $0x30] sm:$0xff]
    %v182 = vld [vmem:[#allocation5 + $0x38] sm:$0xff]
    %v183 = vld [vmem:[#allocation5 + $0x40] sm:$0xff]
    %v184 = vld [vmem:[#allocation5 + $0x48] sm:$0xff]
    %v185 = vld [vmem:[#allocation5 + $0x50] sm:$0xff]
    %v186 = vld [vmem:[#allocation5 + $0x58] sm:$0xff]
    %v187 = vld [vmem:[#allocation5 + $0x60] sm:$0xff]
    %v188 = vld [vmem:[#allocation5 + $0x68] sm:$0xff]
    %v189 = vld [vmem:[#allocation5 + $0x70] sm:$0xff]
    %v190 = vld [vmem:[#allocation5 + $0x78] sm:$0xff]
    %v191 = vld [vmem:[%s4] sm:$0x7]
    %v192 = vlaneseq
    %v193 = vshrl.u32 %v192, 7
    %v194 = vsub.s32 0, %v193
    %v195 = vrot.slane %v191, %v194
    %196 = vmatprep.subr.mxu0 0.0
    %197 = vmatpush1.msra.mxu0 %v190
    %198 = vmatprep.subr.mxu0 0.0
    %199 = vmatpush1.msra.mxu0 %v189
    %200 = vmatprep.subr.mxu0 0.0
    %201 = vmatpush1.msra.mxu0 %v188
    %202 = vmatprep.subr.mxu0 0.0
    %203 = vmatpush1.msra.mxu0 %v187
    %204 = vmatprep.subr.mxu0 0.0
    %205 = vmatpush1.msra.mxu0 %v186
    %206 = vmatprep.subr.mxu0 0.0
    %207 = vmatpush1.msra.mxu0 %v185
    %208 = vmatprep.subr.mxu0 0.0
    %209 = vmatpush1.msra.mxu0 %v184
    %210 = vmatprep.subr.mxu0 0.0
    %211 = vmatpush1.msra.mxu0 %v183
    %212 = vmatprep.subr.mxu0 0.0
    %213 = vmatpush1.msra.mxu0 %v182
    %214 = vmatprep.subr.mxu0 0.0
    %215 = vmatpush1.msra.mxu0 %v181
    %216 = vmatprep.subr.mxu0 0.0
    %217 = vmatpush1.msra.mxu0 %v180
    %218 = vmatprep.subr.mxu0 0.0
    %219 = vmatpush1.msra.mxu0 %v179
    %220 = vmatprep.subr.mxu0 0.0
    %221 = vmatpush1.msra.mxu0 %v178
    %222 = vmatprep.subr.mxu0 0.0
    %223 = vmatpush1.msra.mxu0 %v177
    %224 = vmatprep.subr.mxu0 0.0
    %225 = vmatpush1.msra.mxu0 %v176
    %226 = vmatprep.subr.mxu0 0.0
    %227 = vmatpush1.msra.mxu0 %v175
    %228 = vmatprep.subr.mxu0 0.0
    %229 = vmatpush2.msra.mxu0 0.0
    %230 = vmatprep.subr.mxu0 0.0
    %231 = vmatpush2.msra.mxu0 0.0
    %232 = vmatprep.subr.mxu0 0.0
    %233 = vmatpush2.msra.mxu0 0.0
    %234 = vmatprep.subr.mxu0 0.0
    %235 = vmatpush2.msra.mxu0 0.0
    %236 = vmatprep.subr.mxu0 0.0
    %237 = vmatpush2.msra.mxu0 0.0
    %238 = vmatprep.subr.mxu0 0.0
    %239 = vmatpush2.msra.mxu0 0.0
    %240 = vmatprep.subr.mxu0 0.0
    %241 = vmatpush2.msra.mxu0 0.0
    %242 = vmatprep.subr.mxu0 0.0
    %243 = vmatpush2.msra.mxu0 0.0
    %244 = vmatprep.subr.mxu0 0.0
    %245 = vmatpush2.msra.mxu0 0.0
    %246 = vmatprep.subr.mxu0 0.0
    %247 = vmatpush2.msra.mxu0 0.0
    %248 = vmatprep.subr.mxu0 0.0
    %249 = vmatpush2.msra.mxu0 0.0
    %250 = vmatprep.subr.mxu0 0.0
    %251 = vmatpush2.msra.mxu0 0.0
    %252 = vmatprep.subr.mxu0 0.0
    %253 = vmatpush2.msra.mxu0 0.0
    %254 = vmatprep.subr.mxu0 0.0
    %255 = vmatpush2.msra.mxu0 0.0
    %256 = vmatprep.subr.mxu0 0.0
    %257 = vmatpush2.msra.mxu0 0.0
    %258 = vmatprep.subr.mxu0 0.0
    %259 = vmatpush2.msra.mxu0 0.0
    %260 = vmatprep.mubr.f32.mxu0 0.0
    %261 = vmatmul.mubr.f32.gmra.mxu0 %v174
    %v262 = vpop.f32.mrf.mxu0
    %v263 = vadd.f32 %v195, %v262
    %v264 = vpop.f32.mrf.mxu0
    %265 = vdwg.mxu0
    %266 = vadd.xlane.f32.xlu0 %v263
    %v267 = vpop.xlane.xlu0 %266
    %v268 = vmul.f32 %v267, %v154
    %v269 = vsub.f32 %v263, %v268
    %v270 = vmul.f32 %v269, %v269
    %271 = vadd.xlane.f32.xlu0 %v270
    %v272 = vpop.xlane.xlu0 %271
    %v273 = vmul.f32 %v272, %v154
    %v274 = vadd.f32 %v273, 1e-05
    %v275 = vrsqrt.pop %v274
    %v276 = vmul.f32 %v269, %v275
    %v277 = vlaneseq
    %v278 = vshrl.u32 %v277, 7
    %v279 = vsub.s32 1, %v278
    %v280 = vrot.slane %v191, %v279
    %v281 = vmul.f32 %v276, %v280
    %v282 = vlaneseq
    %v283 = vshrl.u32 %v282, 7
    %v284 = vsub.s32 2, %v283
    %v285 = vrot.slane %v191, %v284
    %v286 = vadd.f32 %v281, %v285
    %v287 = vmax.f32 %v286, 0.0
    %v288 = vld [vmem:[#allocation7] sm:$0xff]
    %v289 = vld [vmem:[#allocation7 + $0x8] sm:$0xff]
    %v290 = vld [vmem:[#allocation7 + $0x10] sm:$0xff]
    %v291 = vld [vmem:[#allocation7 + $0x18] sm:$0xff]
    %v292 = vld [vmem:[#allocation7 + $0x20] sm:$0xff]
    %v293 = vld [vmem:[#allocation7 + $0x28] sm:$0xff]
    %v294 = vld [vmem:[#allocation7 + $0x30] sm:$0xff]
    %v295 = vld [vmem:[#allocation7 + $0x38] sm:$0xff]
    %v296 = vld [vmem:[#allocation7 + $0x40] sm:$0xff]
    %v297 = vld [vmem:[#allocation7 + $0x48] sm:$0xff]
    %v298 = vld [vmem:[#allocation7 + $0x50] sm:$0xff]
    %v299 = vld [vmem:[#allocation7 + $0x58] sm:$0xff]
    %v300 = vld [vmem:[#allocation7 + $0x60] sm:$0xff]
    %v301 = vld [vmem:[#allocation7 + $0x68] sm:$0xff]
    %v302 = vld [vmem:[#allocation7 + $0x70] sm:$0xff]
    %v303 = vld [vmem:[#allocation7 + $0x78] sm:$0xff]
    %s304 = scalar_lea.vmem [#allocation2], 32
    %v305 = vld [vmem:[%s304] sm:$0xff]
    %v306 = vld [vmem:[%s304 + $0x8] sm:$0xff]
    %v307 = vld [vmem:[%s304 + $0x10] sm:$0xff]
    %v308 = vld [vmem:[%s304 + $0x18] sm:$0xff]
    %s309 = scalar_lea.vmem %s2, 4
    %v310 = vld [vmem:[%s309] sm:$0x7]
    %v311 = vlaneseq
    %v312 = vshrl.u32 %v311, 7
    %v313 = vsub.s32 0, %v312
    %v314 = vrot.slane %v310, %v313
    %315 = vmatprep.subr.mxu0 0.0
    %316 = vmatpush1.msra.mxu0 0.0
    %317 = vmatprep.subr.mxu0 0.0
    %318 = vmatpush1.msra.mxu0 0.0
    %319 = vmatprep.subr.mxu0 0.0
    %320 = vmatpush1.msra.mxu0 0.0
    %321 = vmatprep.subr.mxu0 0.0
    %322 = vmatpush1.msra.mxu0 0.0
    %323 = vmatprep.subr.mxu0 0.0
    %324 = vmatpush1.msra.mxu0 0.0
    %325 = vmatprep.subr.mxu0 0.0
    %326 = vmatpush1.msra.mxu0 0.0
    %327 = vmatprep.subr.mxu0 0.0
    %328 = vmatpush1.msra.mxu0 0.0
    %329 = vmatprep.subr.mxu0 0.0
    %330 = vmatpush1.msra.mxu0 0.0
    %331 = vmatprep.subr.mxu0 0.0
    %332 = vmatpush1.msra.mxu0 0.0
    %333 = vmatprep.subr.mxu0 0.0
    %334 = vmatpush1.msra.mxu0 0.0
    %335 = vmatprep.subr.mxu0 0.0
    %336 = vmatpush1.msra.mxu0 0.0
    %337 = vmatprep.subr.mxu0 0.0
    %338 = vmatpush1.msra.mxu0 0.0
    %339 = vmatprep.subr.mxu0 0.0
    %340 = vmatpush1.msra.mxu0 %v308
    %341 = vmatprep.subr.mxu0 0.0
    %342 = vmatpush1.msra.mxu0 %v307
    %343 = vmatprep.subr.mxu0 0.0
    %344 = vmatpush1.msra.mxu0 %v306
    %345 = vmatprep.subr.mxu0 0.0
    %346 = vmatpush1.msra.mxu0 %v305
    %347 = vmatprep.subr.mxu0 0.0
    %348 = vmatpush2.msra.mxu0 0.0
    %349 = vmatprep.subr.mxu0 0.0
    %350 = vmatpush2.msra.mxu0 0.0
    %351 = vmatprep.subr.mxu0 0.0
    %352 = vmatpush2.msra.mxu0 0.0
    %353 = vmatprep.subr.mxu0 0.0
    %354 = vmatpush2.msra.mxu0 0.0
    %355 = vmatprep.subr.mxu0 0.0
    %356 = vmatpush2.msra.mxu0 0.0
    %357 = vmatprep.subr.mxu0 0.0
    %358 = vmatpush2.msra.mxu0 0.0
    %359 = vmatprep.subr.mxu0 0.0
    %360 = vmatpush2.msra.mxu0 0.0
    %361 = vmatprep.subr.mxu0 0.0
    %362 = vmatpush2.msra.mxu0 0.0
    %363 = vmatprep.subr.mxu0 0.0
    %364 = vmatpush2.msra.mxu0 0.0
    %365 = vmatprep.subr.mxu0 0.0
    %366 = vmatpush2.msra.mxu0 0.0
    %367 = vmatprep.subr.mxu0 0.0
    %368 = vmatpush2.msra.mxu0 0.0
    %369 = vmatprep.subr.mxu0 0.0
    %370 = vmatpush2.msra.mxu0 0.0
    %371 = vmatprep.subr.mxu0 0.0
    %372 = vmatpush2.msra.mxu0 0.0
    %373 = vmatprep.subr.mxu0 0.0
    %374 = vmatpush2.msra.mxu0 0.0
    %375 = vmatprep.subr.mxu0 0.0
    %376 = vmatpush2.msra.mxu0 0.0
    %377 = vmatprep.subr.mxu0 0.0
    %378 = vmatpush2.msra.mxu0 0.0
    %379 = vmatprep.mubr.f32.mxu0 0.0
    %380 = vmatmul.mubr.f32.gmra.mxu0 %v80
    %v381 = vpop.f32.mrf.mxu0
    %v382 = vadd.f32 %v314, %v381
    %v383 = vpop.f32.mrf.mxu0
    %384 = vdwg.mxu0
    %385 = vadd.xlane.f32.xlu0 %v382
    %v386 = vpop.xlane.xlu0 %385
    %v387 = vmul.f32 %v386, %v154
    %v388 = vsub.f32 %v382, %v387
    %v389 = vmul.f32 %v388, %v388
    %390 = vadd.xlane.f32.xlu0 %v389
    %v391 = vpop.xlane.xlu0 %390
    %v392 = vmul.f32 %v391, %v154
    %v393 = vadd.f32 %v392, 1e-05
    %v394 = vrsqrt.pop %v393
    %v395 = vmul.f32 %v388, %v394
    %v396 = vlaneseq
    %v397 = vshrl.u32 %v396, 7
    %v398 = vsub.s32 1, %v397
    %v399 = vrot.slane %v310, %v398
    %v400 = vmul.f32 %v395, %v399
    %v401 = vlaneseq
    %v402 = vshrl.u32 %v401, 7
    %v403 = vsub.s32 2, %v402
    %v404 = vrot.slane %v310, %v403
    %v405 = vadd.f32 %v400, %v404
    %v406 = vmax.f32 %v405, 0.0
    %s407 = scalar_lea.vmem [#allocation5], 128
    %v408 = vld [vmem:[%s407] sm:$0xff]
    %v409 = vld [vmem:[%s407 + $0x8] sm:$0xff]
    %v410 = vld [vmem:[%s407 + $0x10] sm:$0xff]
    %v411 = vld [vmem:[%s407 + $0x18] sm:$0xff]
    %v412 = vld [vmem:[%s407 + $0x20] sm:$0xff]
    %v413 = vld [vmem:[%s407 + $0x28] sm:$0xff]
    %v414 = vld [vmem:[%s407 + $0x30] sm:$0xff]
    %v415 = vld [vmem:[%s407 + $0x38] sm:$0xff]
    %v416 = vld [vmem:[%s407 + $0x40] sm:$0xff]
    %v417 = vld [vmem:[%s407 + $0x48] sm:$0xff]
    %v418 = vld [vmem:[%s407 + $0x50] sm:$0xff]
    %v419 = vld [vmem:[%s407 + $0x58] sm:$0xff]
    %v420 = vld [vmem:[%s407 + $0x60] sm:$0xff]
    %v421 = vld [vmem:[%s407 + $0x68] sm:$0xff]
    %v422 = vld [vmem:[%s407 + $0x70] sm:$0xff]
    %v423 = vld [vmem:[%s407 + $0x78] sm:$0xff]
    %s424 = scalar_lea.vmem %s4, 4
    %v425 = vld [vmem:[%s424] sm:$0x7]
    %v426 = vlaneseq
    %v427 = vshrl.u32 %v426, 7
    %v428 = vsub.s32 0, %v427
    %v429 = vrot.slane %v425, %v428
    %430 = vmatprep.subr.mxu0 0.0
    %431 = vmatpush1.msra.mxu0 %v423
    %432 = vmatprep.subr.mxu0 0.0
    %433 = vmatpush1.msra.mxu0 %v422
    %434 = vmatprep.subr.mxu0 0.0
    %435 = vmatpush1.msra.mxu0 %v421
    %436 = vmatprep.subr.mxu0 0.0
    %437 = vmatpush1.msra.mxu0 %v420
    %438 = vmatprep.subr.mxu0 0.0
    %439 = vmatpush1.msra.mxu0 %v419
    %440 = vmatprep.subr.mxu0 0.0
    %441 = vmatpush1.msra.mxu0 %v418
    %442 = vmatprep.subr.mxu0 0.0
    %443 = vmatpush1.msra.mxu0 %v417
    %444 = vmatprep.subr.mxu0 0.0
    %445 = vmatpush1.msra.mxu0 %v416
    %446 = vmatprep.subr.mxu0 0.0
    %447 = vmatpush1.msra.mxu0 %v415
    %448 = vmatprep.subr.mxu0 0.0
    %449 = vmatpush1.msra.mxu0 %v414
    %450 = vmatprep.subr.mxu0 0.0
    %451 = vmatpush1.msra.mxu0 %v413
    %452 = vmatprep.subr.mxu0 0.0
    %453 = vmatpush1.msra.mxu0 %v412
    %454 = vmatprep.subr.mxu0 0.0
    %455 = vmatpush1.msra.mxu0 %v411
    %456 = vmatprep.subr.mxu0 0.0
    %457 = vmatpush1.msra.mxu0 %v410
    %458 = vmatprep.subr.mxu0 0.0
    %459 = vmatpush1.msra.mxu0 %v409
    %460 = vmatprep.subr.mxu0 0.0
    %461 = vmatpush1.msra.mxu0 %v408
    %462 = vmatprep.subr.mxu0 0.0
    %463 = vmatpush2.msra.mxu0 0.0
    %464 = vmatprep.subr.mxu0 0.0
    %465 = vmatpush2.msra.mxu0 0.0
    %466 = vmatprep.subr.mxu0 0.0
    %467 = vmatpush2.msra.mxu0 0.0
    %468 = vmatprep.subr.mxu0 0.0
    %469 = vmatpush2.msra.mxu0 0.0
    %470 = vmatprep.subr.mxu0 0.0
    %471 = vmatpush2.msra.mxu0 0.0
    %472 = vmatprep.subr.mxu0 0.0
    %473 = vmatpush2.msra.mxu0 0.0
    %474 = vmatprep.subr.mxu0 0.0
    %475 = vmatpush2.msra.mxu0 0.0
    %476 = vmatprep.subr.mxu0 0.0
    %477 = vmatpush2.msra.mxu0 0.0
    %478 = vmatprep.subr.mxu0 0.0
    %479 = vmatpush2.msra.mxu0 0.0
    %480 = vmatprep.subr.mxu0 0.0
    %481 = vmatpush2.msra.mxu0 0.0
    %482 = vmatprep.subr.mxu0 0.0
    %483 = vmatpush2.msra.mxu0 0.0
    %484 = vmatprep.subr.mxu0 0.0
    %485 = vmatpush2.msra.mxu0 0.0
    %486 = vmatprep.subr.mxu0 0.0
    %487 = vmatpush2.msra.mxu0 0.0
    %488 = vmatprep.subr.mxu0 0.0
    %489 = vmatpush2.msra.mxu0 0.0
    %490 = vmatprep.subr.mxu0 0.0
    %491 = vmatpush2.msra.mxu0 0.0
    %492 = vmatprep.subr.mxu0 0.0
    %493 = vmatpush2.msra.mxu0 0.0
    %494 = vmatprep.mubr.f32.mxu0 0.0
    %495 = vmatmul.mubr.f32.gmra.mxu0 %v406
    %v496 = vpop.f32.mrf.mxu0
    %v497 = vadd.f32 %v429, %v496
    %v498 = vpop.f32.mrf.mxu0
    %499 = vdwg.mxu0
    %500 = vadd.xlane.f32.xlu0 %v497
    %v501 = vpop.xlane.xlu0 %500
    %v502 = vmul.f32 %v501, %v154
    %v503 = vsub.f32 %v497, %v502
    %v504 = vmul.f32 %v503, %v503
    %505 = vadd.xlane.f32.xlu0 %v504
    %v506 = vpop.xlane.xlu0 %505
    %v507 = vmul.f32 %v506, %v154
    %v508 = vadd.f32 %v507, 1e-05
    %v509 = vrsqrt.pop %v508
    %v510 = vmul.f32 %v503, %v509
    %v511 = vlaneseq
    %v512 = vshrl.u32 %v511, 7
    %v513 = vsub.s32 1, %v512
    %v514 = vrot.slane %v425, %v513
    %v515 = vmul.f32 %v510, %v514
    %v516 = vlaneseq
    %v517 = vshrl.u32 %v516, 7
    %v518 = vsub.s32 2, %v517
    %v519 = vrot.slane %v425, %v518
    %v520 = vadd.f32 %v515, %v519
    %v521 = vmax.f32 %v520, 0.0
    %s522 = scalar_lea.vmem [#allocation7], 128
    %v523 = vld [vmem:[%s522] sm:$0xff]
    %v524 = vld [vmem:[%s522 + $0x8] sm:$0xff]
    %v525 = vld [vmem:[%s522 + $0x10] sm:$0xff]
    %v526 = vld [vmem:[%s522 + $0x18] sm:$0xff]
    %v527 = vld [vmem:[%s522 + $0x20] sm:$0xff]
    %v528 = vld [vmem:[%s522 + $0x28] sm:$0xff]
    %v529 = vld [vmem:[%s522 + $0x30] sm:$0xff]
    %v530 = vld [vmem:[%s522 + $0x38] sm:$0xff]
    %v531 = vld [vmem:[%s522 + $0x40] sm:$0xff]
    %v532 = vld [vmem:[%s522 + $0x48] sm:$0xff]
    %v533 = vld [vmem:[%s522 + $0x50] sm:$0xff]
    %v534 = vld [vmem:[%s522 + $0x58] sm:$0xff]
    %v535 = vld [vmem:[%s522 + $0x60] sm:$0xff]
    %v536 = vld [vmem:[%s522 + $0x68] sm:$0xff]
    %v537 = vld [vmem:[%s522 + $0x70] sm:$0xff]
    %v538 = vld [vmem:[%s522 + $0x78] sm:$0xff]
    %539 = vmatprep.subr.mxu0 0.0
    %540 = vmatpush1.msra.mxu0 %v538
    %541 = vmatprep.subr.mxu0 0.0
    %542 = vmatpush1.msra.mxu0 %v537
    %543 = vmatprep.subr.mxu0 0.0
    %544 = vmatpush1.msra.mxu0 %v536
    %545 = vmatprep.subr.mxu0 0.0
    %546 = vmatpush1.msra.mxu0 %v535
    %547 = vmatprep.subr.mxu0 0.0
    %548 = vmatpush1.msra.mxu0 %v534
    %549 = vmatprep.subr.mxu0 0.0
    %550 = vmatpush1.msra.mxu0 %v533
    %551 = vmatprep.subr.mxu0 0.0
    %552 = vmatpush1.msra.mxu0 %v532
    %553 = vmatprep.subr.mxu0 0.0
    %554 = vmatpush1.msra.mxu0 %v531
    %555 = vmatprep.subr.mxu0 0.0
    %556 = vmatpush1.msra.mxu0 %v530
    %557 = vmatprep.subr.mxu0 0.0
    %558 = vmatpush1.msra.mxu0 %v529
    %559 = vmatprep.subr.mxu0 0.0
    %560 = vmatpush1.msra.mxu0 %v528
    %561 = vmatprep.subr.mxu0 0.0
    %562 = vmatpush1.msra.mxu0 %v527
    %563 = vmatprep.subr.mxu0 0.0
    %564 = vmatpush1.msra.mxu0 %v526
    %565 = vmatprep.subr.mxu0 0.0
    %566 = vmatpush1.msra.mxu0 %v525
    %567 = vmatprep.subr.mxu0 0.0
    %568 = vmatpush1.msra.mxu0 %v524
    %569 = vmatprep.subr.mxu0 0.0
    %570 = vmatpush1.msra.mxu0 %v523
    %571 = vmatprep.subr.mxu0 0.0
    %572 = vmatpush2.msra.mxu0 0.0
    %573 = vmatprep.subr.mxu0 0.0
    %574 = vmatpush2.msra.mxu0 0.0
    %575 = vmatprep.subr.mxu0 0.0
    %576 = vmatpush2.msra.mxu0 0.0
    %577 = vmatprep.subr.mxu0 0.0
    %578 = vmatpush2.msra.mxu0 0.0
    %579 = vmatprep.subr.mxu0 0.0
    %580 = vmatpush2.msra.mxu0 0.0
    %581 = vmatprep.subr.mxu0 0.0
    %582 = vmatpush2.msra.mxu0 0.0
    %583 = vmatprep.subr.mxu0 0.0
    %584 = vmatpush2.msra.mxu0 0.0
    %585 = vmatprep.subr.mxu0 0.0
    %586 = vmatpush2.msra.mxu0 0.0
    %587 = vmatprep.subr.mxu0 0.0
    %588 = vmatpush2.msra.mxu0 0.0
    %589 = vmatprep.subr.mxu0 0.0
    %590 = vmatpush2.msra.mxu0 0.0
    %591 = vmatprep.subr.mxu0 0.0
    %592 = vmatpush2.msra.mxu0 0.0
    %593 = vmatprep.subr.mxu0 0.0
    %594 = vmatpush2.msra.mxu0 0.0
    %595 = vmatprep.subr.mxu0 0.0
    %596 = vmatpush2.msra.mxu0 0.0
    %597 = vmatprep.subr.mxu0 0.0
    %598 = vmatpush2.msra.mxu0 0.0
    %599 = vmatprep.subr.mxu0 0.0
    %600 = vmatpush2.msra.mxu0 0.0
    %601 = vmatprep.subr.mxu0 0.0
    %602 = vmatpush2.msra.mxu0 0.0
    %603 = vmatprep.mubr.f32.mxu0 0.0
    %604 = vmatmul.mubr.f32.gmra.mxu0 %v521
    %v605 = vpop.f32.mrf.mxu0
    %v606 = vadd.f32 0.0, %v605
    %v607 = vpop.f32.mrf.mxu0
    %608 = vdwg.mxu0
    %609 = vmatprep.subr.mxu0 0.0
    %610 = vmatpush1.msra.mxu0 %v303
    %611 = vmatprep.subr.mxu0 0.0
    %612 = vmatpush1.msra.mxu0 %v302
    %613 = vmatprep.subr.mxu0 0.0
    %614 = vmatpush1.msra.mxu0 %v301
    %615 = vmatprep.subr.mxu0 0.0
    %616 = vmatpush1.msra.mxu0 %v300
    %617 = vmatprep.subr.mxu0 0.0
    %618 = vmatpush1.msra.mxu0 %v299
    %619 = vmatprep.subr.mxu0 0.0
    %620 = vmatpush1.msra.mxu0 %v298
    %621 = vmatprep.subr.mxu0 0.0
    %622 = vmatpush1.msra.mxu0 %v297
    %623 = vmatprep.subr.mxu0 0.0
    %624 = vmatpush1.msra.mxu0 %v296
    %625 = vmatprep.subr.mxu0 0.0
    %626 = vmatpush1.msra.mxu0 %v295
    %627 = vmatprep.subr.mxu0 0.0
    %628 = vmatpush1.msra.mxu0 %v294
    %629 = vmatprep.subr.mxu0 0.0
    %630 = vmatpush1.msra.mxu0 %v293
    %631 = vmatprep.subr.mxu0 0.0
    %632 = vmatpush1.msra.mxu0 %v292
    %633 = vmatprep.subr.mxu0 0.0
    %634 = vmatpush1.msra.mxu0 %v291
    %635 = vmatprep.subr.mxu0 0.0
    %636 = vmatpush1.msra.mxu0 %v290
    %637 = vmatprep.subr.mxu0 0.0
    %638 = vmatpush1.msra.mxu0 %v289
    %639 = vmatprep.subr.mxu0 0.0
    %640 = vmatpush1.msra.mxu0 %v288
    %641 = vmatprep.subr.mxu0 0.0
    %642 = vmatpush2.msra.mxu0 0.0
    %643 = vmatprep.subr.mxu0 0.0
    %644 = vmatpush2.msra.mxu0 0.0
    %645 = vmatprep.subr.mxu0 0.0
    %646 = vmatpush2.msra.mxu0 0.0
    %647 = vmatprep.subr.mxu0 0.0
    %648 = vmatpush2.msra.mxu0 0.0
    %649 = vmatprep.subr.mxu0 0.0
    %650 = vmatpush2.msra.mxu0 0.0
    %651 = vmatprep.subr.mxu0 0.0
    %652 = vmatpush2.msra.mxu0 0.0
    %653 = vmatprep.subr.mxu0 0.0
    %654 = vmatpush2.msra.mxu0 0.0
    %655 = vmatprep.subr.mxu0 0.0
    %656 = vmatpush2.msra.mxu0 0.0
    %657 = vmatprep.subr.mxu0 0.0
    %658 = vmatpush2.msra.mxu0 0.0
    %659 = vmatprep.subr.mxu0 0.0
    %660 = vmatpush2.msra.mxu0 0.0
    %661 = vmatprep.subr.mxu0 0.0
    %662 = vmatpush2.msra.mxu0 0.0
    %663 = vmatprep.subr.mxu0 0.0
    %664 = vmatpush2.msra.mxu0 0.0
    %665 = vmatprep.subr.mxu0 0.0
    %666 = vmatpush2.msra.mxu0 0.0
    %667 = vmatprep.subr.mxu0 0.0
    %668 = vmatpush2.msra.mxu0 0.0
    %669 = vmatprep.subr.mxu0 0.0
    %670 = vmatpush2.msra.mxu0 0.0
    %671 = vmatprep.subr.mxu0 0.0
    %672 = vmatpush2.msra.mxu0 0.0
    %673 = vmatprep.mubr.f32.mxu0 0.0
    %674 = vmatmul.mubr.f32.gmra.mxu0 %v287
    %v675 = vpop.f32.mrf.mxu0
    %v676 = vadd.f32 %v606, %v675
    %v677 = vpop.f32.mrf.mxu0
    %678 = vdwg.mxu0
    %v679 = vld [vmem:[%s6] sm:$0x1]
    %v681 = vlaneseq
    %v682 = vshrl.u32 %v681, 7
    %v683 = vsub.s32 0, %v682
    %v684 = vrot.slane %v679, %v683
    %v686 = vadd.f32 %v676, %v684
    %687 = vst [vmem:[#allocation8] sm:$0xff] %v686
    // Predicated region
    $region42: #{tpu_custom_call.1} parent=1 // pred_check
      _
    $region43: #{tpu_custom_call.1} parent=1 // pred_check_branch
      %689 = sbr.rel (0) target = $region45
    $region44: #{tpu_custom_call.1} parent=1 // pred_region
      %s691 = ssub.s32 128, 128
      %692 = vsyncadd [#allocation4], %s691
      %s694 = sshll.u32 [#allocation8], 4
      %s695 = int_to_ptr.vmem [resolvable:$true] %s694
      %697 = dma.vmem_to_hbm [thread:$0]  %s695, 128, %s7, [#allocation4]
    $region45: #{tpu_custom_call.1} parent=1 // pred_fallthru
      _
    // Predicated region
    $region46: #{tpu_custom_call.1} parent=1 // pred_check
      _
    $region47: #{tpu_custom_call.1} parent=1 // pred_check_branch
      %699 = sbr.rel (0) target = $region49
    $region48: #{tpu_custom_call.1} parent=1 // pred_region
      %700 = dma.done [#allocation4], 128
    $region49: #{tpu_custom_call.1} parent=1 // pred_fallthru
      _
    %701 = vsyncpa [#allocation3], 1
    %702 = vsyncpa [#allocation6], 1
    %703 = vsyncpa [#allocation4], 1

</llo_original>
